<compile_context>
chip_gen: v5e
topology: v5e:2x2
jax: 0.10.0
libtpu: 0.0.40
codegen_flags: <defaults>
</compile_context>

<pallas_src>
import jax
import jax.numpy as jnp
from jax import lax
from jax.experimental import pallas as pl
from jax.experimental.pallas import tpu as pltpu


def _round_up(x, m):
    return ((x + m - 1) // m) * m


def mlp_edge_kernel(src_ref, dst_ref, psrc_ref, pdst_ref, b1_ref, w2_ref,
                    b2_ref, out_ref):
    """One tile of TE edges, oriented edges-along-lanes.

    src_ref/dst_ref: [1, TE]  int32 edge endpoints (pipelined, lane-major)
    psrc_ref:        [F, N]   bf16  (h @ W1[:F]).T  — resident per-node proj
    pdst_ref:        [F, N]   bf16  (h @ W1[F:]).T  — resident per-node proj
    b1_ref:          [F, 1]   f32
    w2_ref:          [1, F]   f32
    b2_ref:          [1, 1]   f32
    out_ref:         [1, TE]  f32 edge scores (lane-dense store)
    """
    n_nodes = psrc_ref.shape[1]
    te = src_ref.shape[1]

    src = src_ref[...]                                         # [1, TE]
    dst = dst_ref[...]
    node_ids = lax.broadcasted_iota(jnp.int32, (n_nodes, te), 0)

    # Endpoint gather as a one-hot matmul on the MXU.  Exactly one nonzero per
    # column -> the f32 accumulation reproduces the stored bf16 proj row
    # exactly.  (Out-of-range indices yield an all-zero column, not garbage.)
    oh_src = (node_ids == src).astype(psrc_ref.dtype)          # [N, TE]
    oh_dst = (node_ids == dst).astype(pdst_ref.dtype)          # [N, TE]
    g_src = jnp.dot(psrc_ref[...], oh_src,
                    preferred_element_type=jnp.float32)        # [F, TE]
    g_dst = jnp.dot(pdst_ref[...], oh_dst,
                    preferred_element_type=jnp.float32)        # [F, TE]

    # Epilogue in f32: +b1 (lane-broadcast), ReLU, second layer as a [1,F]x[F,TE]
    # matvec (output width 1 never touches a (TE,1) layout), +b2.
    hidden = jnp.maximum(g_src + g_dst + b1_ref[...], 0.0)     # [F, TE]
    score = jnp.dot(w2_ref[...], hidden,
                    preferred_element_type=jnp.float32) + b2_ref[...]   # [1, TE]
    out_ref[...] = score.astype(out_ref.dtype)


def mlp_predictor_forward(h, src_idx, dst_idx, params, *, edge_tile=2048):
    """JAX wrapper reproducing MLPPredictor.forward(g, h) -> edge scores [E]."""
    w1, b1, w2, b2 = params["w1"], params["b1"], params["w2"], params["b2"]
    N, F = h.shape
    E = int(src_idx.shape[0])
    assert w1.shape == (2 * F, F)

    # ---- Hoisted first layer (per-node, O(N*F^2)): exact rewrite of ----------
    #      W1(concat(h_u, h_v)) = h_u @ W1[:F] + h_v @ W1[F:].
    # Stored transposed ([F, N]) and in bf16 so the per-edge kernel's resident
    # footprint is halved and the one-hot gather rides the MXU at bf16 rate.
    h32 = h.astype(jnp.float32)
    proj_src_t = (h32 @ w1[:F, :].astype(jnp.float32)).T.astype(jnp.bfloat16)
    proj_dst_t = (h32 @ w1[F:, :].astype(jnp.float32)).T.astype(jnp.bfloat16)

    b1_col = b1.reshape(F, 1).astype(jnp.float32)
    w2_row = w2.reshape(1, F).astype(jnp.float32)     # [F, 1] -> [1, F]
    b2_sc = b2.reshape(1, 1).astype(jnp.float32)

    # ---- Edge tiling ----------------------------------------------------------
    # TE multiple of 128 (lane width); cap so the grid has >=4 tiles when E is
    # large enough (keeps both TensorCores busy on dual-TC chips).
    TE = min(int(edge_tile), _round_up(max(E, 1), 128))
    TE = max(128, min(TE, _round_up(pl.cdiv(max(E, 1), 4), 128)))

    # ---- VMEM budget (resident + streamed + kernel intermediates) -------------
    try:
        phys_vmem = int(getattr(pltpu.get_tpu_info(), "vmem_capacity_bytes",
                                64 * 2**20))
    except Exception:
        phys_vmem = 64 * 2**20                      # conservative (v7x-sized)
    vmem_cap = int(0.8 * phys_vmem)                 # ~51 MiB v7x, ~102 MiB v5e/v6e

    n_pad8 = _round_up(N, 8)

    def footprint(te):
        resident = 2 * (2 * F * N * 2 + (2 * F + 1) * 4)   # proj (bf16) + b1/w2/b2, x2 buffers
        streamed = 2 * (2 * te * 4 + te * 4)               # double-buffered idx in + out
        onehots = 2 * n_pad8 * te * 2 + n_pad8 * te * 4    # bf16 one-hots + iota/cmp temp
        interm = (3 * F * te + te) * 4                     # g_src, g_dst, hidden, score (f32)
        return resident + streamed + onehots + interm

    while TE > 128 and 2 * footprint(TE) > vmem_cap:
        TE = max(128, (TE // 2 // 128) * 128)

    vmem_limit = int(min(vmem_cap, max(32 * 2**20, 2 * footprint(TE))))

    # ---- Pad + reshape edges to (n_tiles, TE) so index tiles are lane-major ---
    E_pad = _round_up(max(E, 1), TE)
    n_tiles = E_pad // TE
    pad = E_pad - E
    src2d = jnp.pad(src_idx.astype(jnp.int32), (0, pad)).reshape(n_tiles, TE)
    dst2d = jnp.pad(dst_idx.astype(jnp.int32), (0, pad)).reshape(n_tiles, TE)

    out = pl.pallas_call(
        mlp_edge_kernel,
        out_shape=jax.ShapeDtypeStruct((n_tiles, TE), jnp.float32),
        grid_spec=pltpu.PrefetchScalarGridSpec(
            num_scalar_prefetch=0,
            grid=(n_tiles,),
            in_specs=[
                pl.BlockSpec((1, TE), lambda i: (i, 0)),   # src idx tile (lane-major)
                pl.BlockSpec((1, TE), lambda i: (i, 0)),   # dst idx tile
                pl.BlockSpec((F, N), lambda i: (0, 0)),    # proj_src.T (resident)
                pl.BlockSpec((F, N), lambda i: (0, 0)),    # proj_dst.T (resident)
                pl.BlockSpec((F, 1), lambda i: (0, 0)),    # b1 column
                pl.BlockSpec((1, F), lambda i: (0, 0)),    # W2 row
                pl.BlockSpec((1, 1), lambda i: (0, 0)),    # b2
            ],
            out_specs=pl.BlockSpec((1, TE), lambda i: (i, 0)),   # lane-dense scores
        ),
        compiler_params=pltpu.CompilerParams(
            dimension_semantics=("parallel",),
            vmem_limit_bytes=vmem_limit,
        ),
    )(src2d, dst2d, proj_src_t, proj_dst_t, b1_col, w2_row, b2_sc)

    return out.reshape(E_pad)[:E]    # squeeze(1) -> [E], padding dropped


def init_params(key, h_feats):
    """Deterministic init matching nn.Linear shapes.
    PyTorch: W1.weight [h, 2h], W1.bias [h]; W2.weight [1, h], W2.bias [1].
    Weights stored pre-transposed (in_dim, out_dim) for x @ W."""
    k1, k2, k3, k4 = jax.random.split(key, 4)
    w1 = jax.random.normal(k1, (2 * h_feats, h_feats), jnp.float32) * 0.1
    b1 = jax.random.normal(k2, (1, h_feats), jnp.float32) * 0.1
    w2 = jax.random.normal(k3, (h_feats, 1), jnp.float32) * 0.1
    b2 = jax.random.normal(k4, (1, 1), jnp.float32) * 0.1
    return {"w1": w1, "b1": b1, "w2": w2, "b2": b2}


def reference_forward(h, src_idx, dst_idx, params):
    h_cat = jnp.concatenate([h[src_idx], h[dst_idx]], axis=1)
    hid = jnp.maximum(h_cat @ params["w1"] + params["b1"], 0.0)
    return (hid @ params["w2"] + params["b2"])[:, 0]


if __name__ == "__main__":
    key = jax.random.PRNGKey(0)
    k_h, k_p = jax.random.split(key, 2)

    h_feats = 32
    num_nodes = 8
    num_edges = 8

    h = jax.random.normal(k_h, (num_nodes, h_feats), jnp.float32)
    params = init_params(k_p, h_feats)

    # Deterministic small graph: edge list (src -> dst)
    src_idx = jnp.array([0, 1, 2, 3, 4, 5, 6, 7], dtype=jnp.int32)
    dst_idx = jnp.array([1, 2, 3, 4, 5, 6, 7, 0], dtype=jnp.int32)

    scores = jax.block_until_ready(
        mlp_predictor_forward(h, src_idx, dst_idx, params))
    ref = reference_forward(h, src_idx, dst_idx, params)
    assert scores.shape == (num_edges,)
    # bf16 proj tables bound the error (~1e-3 abs for these magnitudes).
    assert jnp.allclose(scores, ref, atol=1e-2, rtol=1e-2)

    # Multi-tile path: more edges than one tile (exercises grid > 1 + padding).
    k_s, k_d = jax.random.split(jax.random.PRNGKey(1), 2)
    num_edges2 = 300
    src2 = jax.random.randint(k_s, (num_edges2,), 0, num_nodes, dtype=jnp.int32)
    dst2 = jax.random.randint(k_d, (num_edges2,), 0, num_nodes, dtype=jnp.int32)
    scores2 = jax.block_until_ready(
        mlp_predictor_forward(h, src2, dst2, params, edge_tile=128))
    ref2 = reference_forward(h, src2, dst2, params)
    assert scores2.shape == (num_edges2,)
    assert jnp.allclose(scores2, ref2, atol=1e-2, rtol=1e-2)

    print("KERNEL_OK")
</pallas_src>

<mosaic_0001>
module attributes {stable_mosaic.version = 11 : i64} {
  func.func @mlp_edge_kernel(%arg0: i32, %arg1: memref<1x128xi32, #tpu.memory_space<vmem>>, %arg2: memref<1x128xi32, #tpu.memory_space<vmem>>, %arg3: memref<32x8xbf16, #tpu.memory_space<vmem>>, %arg4: memref<32x8xbf16, #tpu.memory_space<vmem>>, %arg5: memref<32x1xf32, #tpu.memory_space<vmem>>, %arg6: memref<1x32xf32, #tpu.memory_space<vmem>>, %arg7: memref<1x1xf32, #tpu.memory_space<vmem>>, %arg8: memref<1x128xf32, #tpu.memory_space<vmem>>) attributes {dimension_semantics = [#tpu.dimension_semantics<parallel>], iteration_bounds = array<i64: 1>, scalar_prefetch = 0 : i64, scratch_operands = 0 : i64, tpu.core_type = #tpu.core_type<tc>, window_params = [{transform_indices = @transform_0, window_bounds = array<i64: 1, 128>}, {transform_indices = @transform_1, window_bounds = array<i64: 1, 128>}, {pipeline_mode = #tpu.pipeline_mode<synchronous>, transform_indices = @transform_2, window_bounds = array<i64: 32, 8>}, {pipeline_mode = #tpu.pipeline_mode<synchronous>, transform_indices = @transform_3, window_bounds = array<i64: 32, 8>}, {pipeline_mode = #tpu.pipeline_mode<synchronous>, transform_indices = @transform_4, window_bounds = array<i64: 32, 1>}, {pipeline_mode = #tpu.pipeline_mode<synchronous>, transform_indices = @transform_5, window_bounds = array<i64: 1, 32>}, {pipeline_mode = #tpu.pipeline_mode<synchronous>, transform_indices = @transform_6, window_bounds = array<i64: 1, 1>}, {transform_indices = @transform_7, window_bounds = array<i64: 1, 128>}]} {
    %c0 = arith.constant 0 : index
    %c0_0 = arith.constant 0 : index
    %0 = vector.load %arg1[%c0, %c0_0] : memref<1x128xi32, #tpu.memory_space<vmem>>, vector<1x128xi32>
    %c0_1 = arith.constant 0 : index
    %c0_2 = arith.constant 0 : index
    %1 = vector.load %arg2[%c0_1, %c0_2] : memref<1x128xi32, #tpu.memory_space<vmem>>, vector<1x128xi32>
    %2 = tpu.iota {dimensions = array<i32: 0>} : vector<8x128xi32>
    %3 = vector.broadcast %0 : vector<1x128xi32> to vector<8x128xi32>
    %4 = arith.cmpi eq, %2, %3 : vector<8x128xi32>
    %5 = arith.extui %4 : vector<8x128xi1> to vector<8x128xi32>
    %6 = arith.sitofp %5 : vector<8x128xi32> to vector<8x128xf32>
    %7 = arith.truncf %6 : vector<8x128xf32> to vector<8x128xbf16>
    %8 = vector.broadcast %1 : vector<1x128xi32> to vector<8x128xi32>
    %9 = arith.cmpi eq, %2, %8 : vector<8x128xi32>
    %10 = arith.extui %9 : vector<8x128xi1> to vector<8x128xi32>
    %11 = arith.sitofp %10 : vector<8x128xi32> to vector<8x128xf32>
    %12 = arith.truncf %11 : vector<8x128xf32> to vector<8x128xbf16>
    %c0_3 = arith.constant 0 : index
    %c0_4 = arith.constant 0 : index
    %13 = vector.load %arg3[%c0_3, %c0_4] : memref<32x8xbf16, #tpu.memory_space<vmem>>, vector<32x8xbf16>
    %cst = arith.constant dense<0.000000e+00> : vector<32x128xf32>
    %14 = tpu.matmul %13, %7, %cst {dimension_numbers = #tpu.dot_dimension_numbers<[1], [0], [0], [1], [0, 0, 1, 1], [], []>} : vector<32x8xbf16>, vector<8x128xbf16>, vector<32x128xf32> -> vector<32x128xf32>
    %c0_5 = arith.constant 0 : index
    %c0_6 = arith.constant 0 : index
    %15 = vector.load %arg4[%c0_5, %c0_6] : memref<32x8xbf16, #tpu.memory_space<vmem>>, vector<32x8xbf16>
    %cst_7 = arith.constant dense<0.000000e+00> : vector<32x128xf32>
    %16 = tpu.matmul %15, %12, %cst_7 {dimension_numbers = #tpu.dot_dimension_numbers<[1], [0], [0], [1], [0, 0, 1, 1], [], []>} : vector<32x8xbf16>, vector<8x128xbf16>, vector<32x128xf32> -> vector<32x128xf32>
    %17 = arith.addf %14, %16 : vector<32x128xf32>
    %c0_8 = arith.constant 0 : index
    %c0_9 = arith.constant 0 : index
    %18 = vector.load %arg5[%c0_8, %c0_9] : memref<32x1xf32, #tpu.memory_space<vmem>>, vector<32x1xf32>
    %19 = vector.broadcast %18 : vector<32x1xf32> to vector<32x128xf32>
    %20 = arith.addf %17, %19 : vector<32x128xf32>
    %cst_10 = arith.constant 0.000000e+00 : f32
    %21 = vector.broadcast %cst_10 : f32 to vector<32x128xf32>
    %22 = arith.maximumf %20, %21 : vector<32x128xf32>
    %c0_11 = arith.constant 0 : index
    %c0_12 = arith.constant 0 : index
    %23 = vector.load %arg6[%c0_11, %c0_12] : memref<1x32xf32, #tpu.memory_space<vmem>>, vector<1x32xf32>
    %cst_13 = arith.constant dense<0.000000e+00> : vector<1x128xf32>
    %24 = tpu.matmul %23, %22, %cst_13 {dimension_numbers = #tpu.dot_dimension_numbers<[1], [0], [0], [1], [0, 0, 1, 1], [], []>} : vector<1x32xf32>, vector<32x128xf32>, vector<1x128xf32> -> vector<1x128xf32>
    %c0_14 = arith.constant 0 : index
    %c0_15 = arith.constant 0 : index
    %25 = vector.load %arg7[%c0_14, %c0_15] : memref<1x1xf32, #tpu.memory_space<vmem>>, vector<1x1xf32>
    %26 = vector.broadcast %25 : vector<1x1xf32> to vector<1x128xf32>
    %27 = arith.addf %24, %26 : vector<1x128xf32>
    %c0_16 = arith.constant 0 : index
    %c0_17 = arith.constant 0 : index
    %28 = vector.load %arg8[%c0_16, %c0_17] : memref<1x128xf32, #tpu.memory_space<vmem>>, vector<1x128xf32>
    tpu.vector_store %arg8[%c0_16, %c0_17], %27 {strides = array<i32>} : memref<1x128xf32, #tpu.memory_space<vmem>>, vector<1x128xf32>,
    return
  }
  func.func @transform_0(%arg0: i32) -> (i32, i32) {
    %c0_i32 = arith.constant 0 : i32
    %c0_i32_0 = arith.constant 0 : i32
    return %arg0, %c0_i32 : i32, i32
  }
  func.func @transform_1(%arg0: i32) -> (i32, i32) {
    %c0_i32 = arith.constant 0 : i32
    %c0_i32_0 = arith.constant 0 : i32
    return %arg0, %c0_i32 : i32, i32
  }
  func.func @transform_2(%arg0: i32) -> (i32, i32) {
    %c0_i32 = arith.constant 0 : i32
    %c0_i32_0 = arith.constant 0 : i32
    %c0_i32_1 = arith.constant 0 : i32
    return %c0_i32, %c0_i32_0 : i32, i32
  }
  func.func @transform_3(%arg0: i32) -> (i32, i32) {
    %c0_i32 = arith.constant 0 : i32
    %c0_i32_0 = arith.constant 0 : i32
    %c0_i32_1 = arith.constant 0 : i32
    return %c0_i32, %c0_i32_0 : i32, i32
  }
  func.func @transform_4(%arg0: i32) -> (i32, i32) {
    %c0_i32 = arith.constant 0 : i32
    %c0_i32_0 = arith.constant 0 : i32
    %c0_i32_1 = arith.constant 0 : i32
    return %c0_i32, %c0_i32_0 : i32, i32
  }
  func.func @transform_5(%arg0: i32) -> (i32, i32) {
    %c0_i32 = arith.constant 0 : i32
    %c0_i32_0 = arith.constant 0 : i32
    %c0_i32_1 = arith.constant 0 : i32
    return %c0_i32, %c0_i32_0 : i32, i32
  }
  func.func @transform_6(%arg0: i32) -> (i32, i32) {
    %c0_i32 = arith.constant 0 : i32
    %c0_i32_0 = arith.constant 0 : i32
    %c0_i32_1 = arith.constant 0 : i32
    return %c0_i32, %c0_i32_0 : i32, i32
  }
  func.func @transform_7(%arg0: i32) -> (i32, i32) {
    %c0_i32 = arith.constant 0 : i32
    %c0_i32_0 = arith.constant 0 : i32
    return %arg0, %c0_i32 : i32, i32
  }
}

</mosaic_0001>

<llo_original>
// kernel: tpu_custom_call.1
$region0: #{tpu_custom_call.1}
  #allocation0 [shape = 'u32[]', space=smem, size = 0x4, offset = 0x4, fixed_abs, tag = 'smem constant byte address 0x4 - core index']
  #allocation1 [shape = 'u32[72,128]{1,0:T(1,128)}', space=vmem, size = 0x9000, scoped, tag = 'internal scratch']
  #allocation2 [shape = 'f32[1,1]{1,0:T(1,128)S(1)}', space=vmem, size = 0x200, scoped, tag = 'scoped memory for tpu_custom_call.1']
  %s0 = inlined_call_operand.vmem [shape: s32[1,128], index: 0, kind: input, shape index: {}]
  %s1 = inlined_call_operand.vmem [shape: s32[1,128], index: 1, kind: input, shape index: {}]
  %s2 = inlined_call_operand.vmem [shape: bf16[32,8], index: 2, kind: input, shape index: {}]
  %s3 = inlined_call_operand.vmem [shape: bf16[32,8], index: 3, kind: input, shape index: {}]
  %s4 = inlined_call_operand.vmem [shape: f32[32,1], index: 4, kind: input, shape index: {}]
  %s5 = inlined_call_operand.vmem [shape: f32[1,32], index: 5, kind: input, shape index: {}]
  %s6 = inlined_call_operand.<no memory space> [shape: f32[1,1], index: 6, kind: input, shape index: {}]
  %s7 = inlined_call_operand.hbm [shape: f32[1,128], index: 7, kind: output, shape index: {}]
  %s8 = sld [smem:[#allocation0]]
  $region38: #{tpu_custom_call.1} parent=0
    _
  %s10 = ssub.s32 1, %s8
  %s11 = scalar_select 0, %s10, %s8
  %v12 = vstv %s6
  %13 = vst [vmem:[#allocation2] sm:$0x1] %v12
  $region1: #{tpu_custom_call.1} parent=0
    #allocation3 [shape = 'u8[512]{0}', space=vmem, size = 0x400, scoped, tag = 'output window, operand 0, single buffered']
    #allocation4 [shape = 's32[1]{0}', space=sflag, size = 0x4, scoped, tag = 'scoped memory for tpu_custom_call.1']
    %14 = vsyncpa [#allocation4], 0
    // Predicated region
    $region2: #{tpu_custom_call.1} parent=1 // pred_check
      _
    $region3: #{tpu_custom_call.1} parent=1 // pred_check_branch
      %16 = sbr.rel (0) target = $region5
    $region4: #{tpu_custom_call.1} parent=1 // pred_region
      _
    $region5: #{tpu_custom_call.1} parent=1 // pred_fallthru
      _
    // Predicated region
    $region6: #{tpu_custom_call.1} parent=1 // pred_check
      _
    $region7: #{tpu_custom_call.1} parent=1 // pred_check_branch
      %18 = sbr.rel (0) target = $region9
    $region8: #{tpu_custom_call.1} parent=1 // pred_region
      _
    $region9: #{tpu_custom_call.1} parent=1 // pred_fallthru
      _
    // Predicated region
    $region10: #{tpu_custom_call.1} parent=1 // pred_check
      _
    $region11: #{tpu_custom_call.1} parent=1 // pred_check_branch
      %20 = sbr.rel (0) target = $region13
    $region12: #{tpu_custom_call.1} parent=1 // pred_region
      _
    $region13: #{tpu_custom_call.1} parent=1 // pred_fallthru
      _
    // Predicated region
    $region14: #{tpu_custom_call.1} parent=1 // pred_check
      _
    $region15: #{tpu_custom_call.1} parent=1 // pred_check_branch
      %22 = sbr.rel (0) target = $region17
    $region16: #{tpu_custom_call.1} parent=1 // pred_region
      _
    $region17: #{tpu_custom_call.1} parent=1 // pred_fallthru
      _
    // Predicated region
    $region18: #{tpu_custom_call.1} parent=1 // pred_check
      _
    $region19: #{tpu_custom_call.1} parent=1 // pred_check_branch
      %24 = sbr.rel (0) target = $region21
    $region20: #{tpu_custom_call.1} parent=1 // pred_region
      _
    $region21: #{tpu_custom_call.1} parent=1 // pred_fallthru
      _
    // Predicated region
    $region22: #{tpu_custom_call.1} parent=1 // pred_check
      _
    $region23: #{tpu_custom_call.1} parent=1 // pred_check_branch
      %26 = sbr.rel (0) target = $region25
    $region24: #{tpu_custom_call.1} parent=1 // pred_region
      _
    $region25: #{tpu_custom_call.1} parent=1 // pred_fallthru
      _
    // Predicated region
    $region26: #{tpu_custom_call.1} parent=1 // pred_check
      _
    $region27: #{tpu_custom_call.1} parent=1 // pred_check_branch
      %28 = sbr.rel (0) target = $region29
    $region28: #{tpu_custom_call.1} parent=1 // pred_region
      _
    $region29: #{tpu_custom_call.1} parent=1 // pred_fallthru
      _
    %v30 = vld [vmem:[%s0] sm:$0x1]
    %v31 = vld [vmem:[%s1] sm:$0x1]
    %v32 = vlaneseq
    %v33 = vshrl.u32 %v32, 7
    %v34 = vperm.slane %v30, 0
    %vm35 = vcmp.eq.s32.totalorder %v33, %v34
    %v36 = vsel %vm35, 1, 0
    %v37 = vcvt.s32.f32 %v36
    %v38 = vpack.c.bf16 %v37, %v37
    %v39 = vperm.slane %v31, 0
    %vm40 = vcmp.eq.s32.totalorder %v33, %v39
    %v41 = vsel %vm40, 1, 0
    %v42 = vcvt.s32.f32 %v41
    %v43 = vpack.c.bf16 %v42, %v42
    %v44 = vld [vmem:[%s2] sm:$0xf]
    %v45 = vld [vmem:[%s2 + $0x4] sm:$0xf]
    %v46 = vld [vmem:[%s2 + $0x8] sm:$0xf]
    %v47 = vld [vmem:[%s2 + $0xc] sm:$0xf]
    %v48 = vld [vmem:[%s3] sm:$0xf]
    %v49 = vld [vmem:[%s3 + $0x4] sm:$0xf]
    %v50 = vld [vmem:[%s3 + $0x8] sm:$0xf]
    %v51 = vld [vmem:[%s3 + $0xc] sm:$0xf]
    %v56 = vunpack.c.l.b16 %v48
    %v57 = vunpack.c.l.b16 %v49
    %v58 = vunpack.c.l.b16 %v50
    %v59 = vunpack.c.l.b16 %v51
    %v60 = vpack.c.b16 %v57, %v56
    %v61 = vpack.c.b16 %v59, %v58
    %vm62 = vcmask 64512
    %v64 = vsel %vm62, %v60, 0
    %v67 = vsel %vm62, %v61, 0
    %vm69 = vcmask 1043456
    %v71 = vsel %vm69, %v43, 0
    %73 = vmatpush.bf16.msra.mxu0 0
    %74 = vmatpush.bf16.msra.mxu0 0
    %75 = vmatpush.bf16.msra.mxu0 0
    %76 = vmatpush.bf16.msra.mxu0 0
    %77 = vmatpush.bf16.msra.mxu0 0
    %78 = vmatpush.bf16.msra.mxu0 0
    %79 = vmatpush.bf16.msra.mxu0 0
    %80 = vmatpush.bf16.msra.mxu0 %v71
    %81 = vmatmul.bf16.gmra.mxu0 %v64
    %v82 = vpop.f32.mrf.mxu0
    %v83 = vadd.f32 0.0, %v82
    %v84 = vpop.f32.mrf.mxu0
    %v85 = vadd.f32 0.0, %v84
    %86 = vmatmul.bf16.gmra.mxu0 %v67
    %v87 = vpop.f32.mrf.mxu0
    %v88 = vadd.f32 0.0, %v87
    %v89 = vpop.f32.mrf.mxu0
    %v90 = vadd.f32 0.0, %v89
    %91 = vdwg.mxu0
    %v96 = vunpack.c.l.b16 %v44
    %v97 = vunpack.c.l.b16 %v45
    %v98 = vunpack.c.l.b16 %v46
    %v99 = vunpack.c.l.b16 %v47
    %v100 = vpack.c.b16 %v97, %v96
    %v101 = vpack.c.b16 %v99, %v98
    %v103 = vsel %vm62, %v100, 0
    %v106 = vsel %vm62, %v101, 0
    %v109 = vsel %vm69, %v38, 0
    %111 = vmatpush.bf16.msra.mxu0 0
    %112 = vmatpush.bf16.msra.mxu0 0
    %113 = vmatpush.bf16.msra.mxu0 0
    %114 = vmatpush.bf16.msra.mxu0 0
    %115 = vmatpush.bf16.msra.mxu0 0
    %116 = vmatpush.bf16.msra.mxu0 0
    %117 = vmatpush.bf16.msra.mxu0 0
    %118 = vmatpush.bf16.msra.mxu0 %v109
    %119 = vmatmul.bf16.gmra.mxu0 %v103
    %v120 = vpop.f32.mrf.mxu0
    %v121 = vadd.f32 %v83, %v120
    %v122 = vpop.f32.mrf.mxu0
    %v123 = vadd.f32 %v85, %v122
    %124 = vmatmul.bf16.gmra.mxu0 %v106
    %v125 = vpop.f32.mrf.mxu0
    %v126 = vadd.f32 %v88, %v125
    %v127 = vpop.f32.mrf.mxu0
    %v128 = vadd.f32 %v90, %v127
    %129 = vdwg.mxu0
    %v130 = vld [vmem:[%s4] sm:$0xff]
    %v131 = vld [vmem:[%s4 + $0x8] sm:$0xff]
    %v132 = vld [vmem:[%s4 + $0x10] sm:$0xff]
    %v133 = vld [vmem:[%s4 + $0x18] sm:$0xff]
    %135 = vset.pattern.permute.xlu0 0
    %136 = vperm.xlu0 %135, %v130
    %v137 = vpop.permute.xlu0 %136
    %140 = vset.pattern.permute.xlu0 0
    %141 = vperm.xlu0 %140, %v131
    %v142 = vpop.permute.xlu0 %141
    %145 = vset.pattern.permute.xlu0 0
    %146 = vperm.xlu0 %145, %v132
    %v147 = vpop.permute.xlu0 %146
    %150 = vset.pattern.permute.xlu0 0
    %151 = vperm.xlu0 %150, %v133
    %v152 = vpop.permute.xlu0 %151
    %v154 = vadd.f32 %v121, %v137
    %v155 = vadd.f32 %v123, %v142
    %v156 = vadd.f32 %v126, %v147
    %v157 = vadd.f32 %v128, %v152
    %v158 = vmax.f32 %v154, 0.0
    %v159 = vmax.f32 %v155, 0.0
    %v160 = vmax.f32 %v156, 0.0
    %v161 = vmax.f32 %v157, 0.0
    %v162 = vld [vmem:[%s5] sm:$0x1]
    %v163 = vld [vmem:[#allocation2] sm:$0x1]
    %165 = vset.pattern.permute.xlu0 0
    %166 = vperm.xlu0 %165, %v163
    %v167 = vpop.permute.xlu0 %166
    %v169 = vperm.slane %v167, 0
    %vm170 = vcmask 261120
    %v172 = vsel %vm170, %v162, 0
    %174 = vmatpush.msra.mxu0 0.0
    %175 = vmatpush.msra.mxu0 0.0
    %176 = vmatpush.msra.mxu0 0.0
    %177 = vmatpush.msra.mxu0 0.0
    %178 = vmatpush.msra.mxu0 0.0
    %179 = vmatpush.msra.mxu0 0.0
    %180 = vmatpush.msra.mxu0 0.0
    %181 = vmatpush.msra.mxu0 0.0
    %182 = vmatpush.msra.mxu0 0.0
    %183 = vmatpush.msra.mxu0 0.0
    %184 = vmatpush.msra.mxu0 0.0
    %185 = vmatpush.msra.mxu0 0.0
    %186 = vmatpush.msra.mxu0 %v161
    %187 = vmatpush.msra.mxu0 %v160
    %188 = vmatpush.msra.mxu0 %v159
    %189 = vmatpush.msra.mxu0 %v158
    %190 = vmatmul.f32.gmra.mxu0 %v172
    %v191 = vpop.f32.mrf.mxu0
    %v192 = vadd.f32 %v169, %v191
    %193 = vdwg.mxu0
    %194 = vst [vmem:[#allocation3] sm:$0x1] %v192
    // Predicated region
    $region30: #{tpu_custom_call.1} parent=1 // pred_check
      _
    $region31: #{tpu_custom_call.1} parent=1 // pred_check_branch
      %196 = sbr.rel (0) target = $region33
    $region32: #{tpu_custom_call.1} parent=1 // pred_region
      %198 = vsyncadd [#allocation4], 0
      %s200 = sshll.u32 [#allocation3], 4
      %s201 = int_to_ptr.vmem [resolvable:$true] %s200
      %s202 = sshll.u32 %s7, 4
      %s203 = int_to_ptr.hbm [resolvable:$true] %s202
      %205 = dma.vmem_to_hbm [thread:$0]  %s201, 16, %s203, [#allocation4]
    $region33: #{tpu_custom_call.1} parent=1 // pred_fallthru
      _
    // Predicated region
    $region34: #{tpu_custom_call.1} parent=1 // pred_check
      _
    $region35: #{tpu_custom_call.1} parent=1 // pred_check_branch
      %207 = sbr.rel (0) target = $region37
    $region36: #{tpu_custom_call.1} parent=1 // pred_region
      %209 = dma.done [#allocation4], 16
    $region37: #{tpu_custom_call.1} parent=1 // pred_fallthru
      _
    %210 = vsyncpa [#allocation4], 1

</llo_original>
